<compile_context>
chip_gen: v6e
topology: v6e:2x2x1
jax: 0.10.0
libtpu: 0.0.40
codegen_flags: <defaults>
</compile_context>

<pallas_src>
import functools
import math

import numpy as np
import jax
import jax.numpy as jnp
from jax import lax
from jax.experimental import pallas as pl
from jax.experimental.pallas import tpu as pltpu


def coupling_kernel(h_ref, g_ref, ab_ref, w1_ref, b1_ref, w2_ref, b2_ref,
                    out_ref, *, nsq, kw):
    L = h_ref.shape[-1]
    pad = kw // 2

    # Hoisted lane-index boundary masks (shared by both conv stages).
    t = lax.broadcasted_iota(jnp.int32, (1, L), 1)
    masks = [None] * kw
    for k in range(kw):
        d = k - pad
        if d != 0:
            masks[k] = jnp.logical_and(t >= -d, t < L - d)

    def shifted(x, k):
        # x[:, t + (k - pad)], zero outside [0, L): XLU roll + boundary mask.
        d = k - pad
        if d == 0:
            return x
        rolled = pltpu.roll(x, (-d) % L, axis=1)
        return jnp.where(masks[k], rolled, 0.0)

    h_in = h_ref[...].astype(jnp.float32)                        # (bblk*nsq, L)
    h_stack = jnp.concatenate([shifted(h_in, k) for k in range(kw)], axis=0)

    # Adaptive per-sample grouped conv: group expansion + per-sample taps are
    # folded into one block matrix -> a single MXU matmul.
    acc = jnp.dot(g_ref[0], h_stack,
                  preferred_element_type=jnp.float32) + ab_ref[...]
    x = jnp.maximum(acc, 0.0)

    # 1x1 conv (block-diagonal over the batch block) + ReLU.
    x = jnp.dot(w1_ref[...], x,
                preferred_element_type=jnp.float32) + b1_ref[...]
    x = jnp.maximum(x, 0.0)

    # kw-tap output conv fused into a single matmul over stacked shifts.
    x_stack = jnp.concatenate([shifted(x, k) for k in range(kw)], axis=0)
    out2 = jnp.dot(w2_ref[...], x_stack,
                   preferred_element_type=jnp.float32) + b2_ref[...]

    # Rows are ordered (b*2*nsq + o): o < nsq -> s = sigmoid(x+2)+1e-7, else m.
    rows = out2.shape[0]
    o_idx = lax.broadcasted_iota(jnp.int32, (rows, 1), 0) % (2 * nsq)
    sig = jax.nn.sigmoid(out2 + 2.0) + 1e-7
    out_ref[...] = jnp.where(o_idx < nsq, sig, out2).astype(out_ref.dtype)


def _choose_bblk(sbatch, nsq, ncha):
    # Largest batch block <= 8 that divides sbatch and keeps every blocked
    # sublane dimension a multiple of 8 (BlockSpec (8,128) rule).  Fallback:
    # one full-batch block (full-dim blocks are always legal).  Capping at 8
    # also keeps the per-step VMEM working set small (v7x has 64 MiB VMEM).
    for b in range(min(sbatch, 8), 0, -1):
        if sbatch % b == 0 and (b * nsq) % 8 == 0 and (b * ncha) % 8 == 0:
            return b
    return sbatch


def coupling_net(h, emb, params, *, nsq, ncha, kw):
    sbatch, nsq_in, L = h.shape
    assert nsq_in == nsq and ncha % nsq == 0 and kw % 2 == 1
    rep = ncha // nsq
    bblk = _choose_bblk(sbatch, nsq, ncha)
    nblk = sbatch // bblk
    hp = jax.lax.Precision.HIGHEST

    # ---- hoisted batched adapt projections (one lane-dense matmul each) ----
    aw = (jnp.dot(emb, params['adapt_w_w'].T, precision=hp)
          + params['adapt_w_b']).reshape(sbatch, ncha, kw)
    ab = (jnp.dot(emb, params['adapt_b_w'].T, precision=hp)
          + params['adapt_b_b']).reshape(sbatch * ncha, 1)

    # ---- fold group expansion + per-sample taps into one block matrix ----
    # G[blk, b*ncha+c, k*(bblk*nsq)+b'*nsq+q] = taps[b,c,k]*(b==b')*(q==c//rep)
    b_i = jnp.arange(bblk).reshape(bblk, 1, 1, 1)
    c_i = jnp.arange(ncha).reshape(1, ncha, 1, 1)
    bp_i = jnp.arange(bblk).reshape(1, 1, bblk, 1)
    q_i = jnp.arange(nsq).reshape(1, 1, 1, nsq)
    sel = ((b_i == bp_i) & (q_i == c_i // rep)).astype(aw.dtype)
    g = (aw.reshape(nblk, bblk, ncha, kw)[:, :, :, :, None, None]
         * sel[None, :, :, None, :, :]).reshape(nblk, bblk * ncha,
                                                kw * bblk * nsq)

    # ---- shared conv weights, block-diagonalised over the batch block ----
    w1 = params['conv1_w'][:, :, 0]
    eye = jnp.eye(bblk, dtype=w1.dtype)
    w1bd = jnp.kron(eye, w1)                                   # (bblk*ncha, bblk*ncha)
    b1t = jnp.tile(params['conv1_b'][:, None], (bblk, 1))      # (bblk*ncha, 1)
    w2 = params['conv2_w']                                     # (2*nsq, ncha, kw)
    w2bd = jnp.concatenate([jnp.kron(eye, w2[:, :, k]) for k in range(kw)],
                           axis=1)                             # (bblk*2nsq, kw*bblk*ncha)
    b2t = jnp.tile(params['conv2_b'][:, None], (bblk, 1))      # (bblk*2nsq, 1)

    h_flat = h.reshape(sbatch * nsq, L)

    kernel = functools.partial(coupling_kernel, nsq=nsq, kw=kw)
    out = pl.pallas_call(
        kernel,
        out_shape=jax.ShapeDtypeStruct((sbatch * 2 * nsq, L), h.dtype),
        grid_spec=pltpu.PrefetchScalarGridSpec(
            num_scalar_prefetch=0,
            grid=(nblk,),
            in_specs=[
                pl.BlockSpec((bblk * nsq, L), lambda i: (i, 0)),                       # h
                pl.BlockSpec((1, bblk * ncha, kw * bblk * nsq), lambda i: (i, 0, 0)),  # folded taps
                pl.BlockSpec((bblk * ncha, 1), lambda i: (i, 0)),                      # adaptive bias
                pl.BlockSpec((bblk * ncha, bblk * ncha), lambda i: (0, 0)),            # conv1 w (blockdiag)
                pl.BlockSpec((bblk * ncha, 1), lambda i: (0, 0)),                      # conv1 b
                pl.BlockSpec((bblk * 2 * nsq, kw * bblk * ncha), lambda i: (0, 0)),    # conv2 w (fused taps)
                pl.BlockSpec((bblk * 2 * nsq, 1), lambda i: (0, 0)),                   # conv2 b
            ],
            out_specs=pl.BlockSpec((bblk * 2 * nsq, L), lambda i: (i, 0)),
        ),
        compiler_params=pltpu.CompilerParams(dimension_semantics=("parallel",)),
    )(h_flat, g, ab, w1bd, b1t, w2bd, b2t)

    out = out.reshape(sbatch, 2 * nsq, L)
    return out[:, :nsq, :], out[:, nsq:, :]


def reference(h, emb, p, *, nsq, ncha, kw):
    """Plain-JAX reference, mirrors the PyTorch forward."""
    sbatch, _, L = h.shape
    rep = ncha // nsq
    pad = kw // 2
    hp = jax.lax.Precision.HIGHEST
    w = (jnp.dot(emb, p['adapt_w_w'].T, precision=hp) + p['adapt_w_b']).reshape(sbatch, ncha, kw)
    b = jnp.dot(emb, p['adapt_b_w'].T, precision=hp) + p['adapt_b_b']
    h_exp = jnp.repeat(h, rep, axis=1)                               # (sbatch, ncha, L)
    hpad = jnp.pad(h_exp, ((0, 0), (0, 0), (pad, pad)))
    out = sum(w[:, :, k:k + 1] * hpad[:, :, k:k + L] for k in range(kw)) + b[:, :, None]
    x = jax.nn.relu(out)
    x = jnp.einsum('oc,bcl->bol', p['conv1_w'][:, :, 0], x, precision=hp) + p['conv1_b'][None, :, None]
    x = jax.nn.relu(x)
    xpad = jnp.pad(x, ((0, 0), (0, 0), (pad, pad)))
    out2 = sum(jnp.einsum('oc,bcl->bol', p['conv2_w'][:, :, k], xpad[:, :, k:k + L], precision=hp)
               for k in range(kw)) + p['conv2_b'][None, :, None]
    s = jax.nn.sigmoid(out2[:, :nsq] + 2.0) + 1e-7
    m = out2[:, nsq:]
    return s, m


if __name__ == "__main__":
    # Small shapes consistent with the module: h (sbatch, nsq, lchunk), emb (sbatch, semb)
    sbatch, nsq, ncha, semb, lchunk, kw = 2, 4, 16, 32, 128, 3
    assert ncha % nsq == 0 and kw % 2 == 1

    key = jax.random.PRNGKey(0)
    ks = jax.random.split(key, 12)

    def uni(k, shape, bound):
        return jax.random.uniform(k, shape, jnp.float32, -bound, bound)

    bl = 1.0 / math.sqrt(semb)
    bc = 1.0 / math.sqrt(ncha)
    params = {
        'adapt_w_w': uni(ks[0], (ncha * kw, semb), bl),
        'adapt_w_b': uni(ks[1], (ncha * kw,), bl),
        'adapt_b_w': uni(ks[2], (ncha, semb), bl),
        'adapt_b_b': uni(ks[3], (ncha,), bl),
        'conv1_w': uni(ks[4], (ncha, ncha, 1), bc),
        'conv1_b': uni(ks[5], (ncha,), bc),
        # Last conv is zero-initialized in the module's __init__.
        'conv2_w': jnp.zeros((2 * nsq, ncha, kw), jnp.float32),
        'conv2_b': jnp.zeros((2 * nsq,), jnp.float32),
    }

    h = jax.random.normal(ks[6], (sbatch, nsq, lchunk), jnp.float32)
    emb = jax.random.normal(ks[7], (sbatch, semb), jnp.float32)

    # Faithful run (zero-init last conv, as the PyTorch module constructs it).
    s, m = coupling_net(h, emb, params, nsq=nsq, ncha=ncha, kw=kw)
    jax.block_until_ready((s, m))
    s_ref, m_ref = reference(h, emb, params, nsq=nsq, ncha=ncha, kw=kw)
    np.testing.assert_allclose(np.asarray(s), np.asarray(s_ref), rtol=2e-3, atol=2e-3)
    np.testing.assert_allclose(np.asarray(m), np.asarray(m_ref), rtol=2e-3, atol=2e-3)

    # Extra validation with a non-zero last conv so every code path is exercised.
    params_nz = dict(params)
    params_nz['conv2_w'] = uni(ks[8], (2 * nsq, ncha, kw), bc)
    params_nz['conv2_b'] = uni(ks[9], (2 * nsq,), bc)
    s2, m2 = coupling_net(h, emb, params_nz, nsq=nsq, ncha=ncha, kw=kw)
    jax.block_until_ready((s2, m2))
    s2_ref, m2_ref = reference(h, emb, params_nz, nsq=nsq, ncha=ncha, kw=kw)
    np.testing.assert_allclose(np.asarray(s2), np.asarray(s2_ref), rtol=2e-3, atol=2e-3)
    np.testing.assert_allclose(np.asarray(m2), np.asarray(m2_ref), rtol=2e-3, atol=2e-3)

    print("KERNEL_OK")
</pallas_src>

<mosaic_0001>
module attributes {stable_mosaic.version = 11 : i64} {
  func.func @coupling_kernel(%arg0: i32, %arg1: memref<8x128xf32, #tpu.memory_space<vmem>>, %arg2: memref<1x32x24xf32, #tpu.memory_space<vmem>>, %arg3: memref<32x1xf32, #tpu.memory_space<vmem>>, %arg4: memref<32x32xf32, #tpu.memory_space<vmem>>, %arg5: memref<32x1xf32, #tpu.memory_space<vmem>>, %arg6: memref<16x96xf32, #tpu.memory_space<vmem>>, %arg7: memref<16x1xf32, #tpu.memory_space<vmem>>, %arg8: memref<16x128xf32, #tpu.memory_space<vmem>>) attributes {dimension_semantics = [#tpu.dimension_semantics<parallel>], iteration_bounds = array<i64: 1>, scalar_prefetch = 0 : i64, scratch_operands = 0 : i64, tpu.core_type = #tpu.core_type<tc>, window_params = [{transform_indices = @transform_0, window_bounds = array<i64: 8, 128>}, {transform_indices = @transform_1, window_bounds = array<i64: 1, 32, 24>}, {transform_indices = @transform_2, window_bounds = array<i64: 32, 1>}, {pipeline_mode = #tpu.pipeline_mode<synchronous>, transform_indices = @transform_3, window_bounds = array<i64: 32, 32>}, {pipeline_mode = #tpu.pipeline_mode<synchronous>, transform_indices = @transform_4, window_bounds = array<i64: 32, 1>}, {pipeline_mode = #tpu.pipeline_mode<synchronous>, transform_indices = @transform_5, window_bounds = array<i64: 16, 96>}, {pipeline_mode = #tpu.pipeline_mode<synchronous>, transform_indices = @transform_6, window_bounds = array<i64: 16, 1>}, {transform_indices = @transform_7, window_bounds = array<i64: 16, 128>}]} {
    %0 = tpu.iota {dimensions = array<i32: 1>} : vector<1x128xi32>
    %c1_i32 = arith.constant 1 : i32
    %1 = vector.broadcast %c1_i32 : i32 to vector<1x128xi32>
    %2 = arith.cmpi sge, %0, %1 : vector<1x128xi32>
    %c129_i32 = arith.constant 129 : i32
    %3 = vector.broadcast %c129_i32 : i32 to vector<1x128xi32>
    %4 = arith.cmpi slt, %0, %3 : vector<1x128xi32>
    %5 = arith.andi %2, %4 : vector<1x128xi1>
    %c-1_i32 = arith.constant -1 : i32
    %6 = vector.broadcast %c-1_i32 : i32 to vector<1x128xi32>
    %7 = arith.cmpi sge, %0, %6 : vector<1x128xi32>
    %c127_i32 = arith.constant 127 : i32
    %8 = vector.broadcast %c127_i32 : i32 to vector<1x128xi32>
    %9 = arith.cmpi slt, %0, %8 : vector<1x128xi32>
    %10 = arith.andi %7, %9 : vector<1x128xi1>
    %c0 = arith.constant 0 : index
    %c0_0 = arith.constant 0 : index
    %11 = vector.load %arg1[%c0, %c0_0] : memref<8x128xf32, #tpu.memory_space<vmem>>, vector<8x128xf32>
    %c1_i32_1 = arith.constant 1 : i32
    %12 = tpu.dynamic_rotate %11 by %c1_i32_1 dim 1 : vector<8x128xf32>, i32 -> vector<8x128xf32>
    %cst = arith.constant 0.000000e+00 : f32
    %13 = vector.shape_cast %5 : vector<1x128xi1> to vector<1x128xi1>
    %14 = vector.broadcast %13 : vector<1x128xi1> to vector<8x128xi1>
    %15 = vector.broadcast %cst : f32 to vector<8x128xf32>
    %16 = arith.select %14, %12, %15 : vector<8x128xi1>, vector<8x128xf32>
    %c127_i32_2 = arith.constant 127 : i32
    %17 = tpu.dynamic_rotate %11 by %c127_i32_2 dim 1 : vector<8x128xf32>, i32 -> vector<8x128xf32>
    %cst_3 = arith.constant 0.000000e+00 : f32
    %18 = vector.shape_cast %10 : vector<1x128xi1> to vector<1x128xi1>
    %19 = vector.broadcast %18 : vector<1x128xi1> to vector<8x128xi1>
    %20 = vector.broadcast %cst_3 : f32 to vector<8x128xf32>
    %21 = arith.select %19, %17, %20 : vector<8x128xi1>, vector<8x128xf32>
    %22 = tpu.concatenate %16, %11, %21 in 0 : vector<8x128xf32>, vector<8x128xf32>, vector<8x128xf32> -> vector<24x128xf32>
    %c0_4 = arith.constant 0 : index
    %c0_5 = arith.constant 0 : index
    %c0_6 = arith.constant 0 : index
    %23 = vector.load %arg2[%c0_4, %c0_5, %c0_6] : memref<1x32x24xf32, #tpu.memory_space<vmem>>, vector<1x32x24xf32>
    %24 = vector.shape_cast %23 : vector<1x32x24xf32> to vector<32x24xf32>
    %cst_7 = arith.constant dense<0.000000e+00> : vector<32x128xf32>
    %25 = tpu.matmul %24, %22, %cst_7 {dimension_numbers = #tpu.dot_dimension_numbers<[1], [0], [0], [1], [0, 0, 1, 1], [], []>} : vector<32x24xf32>, vector<24x128xf32>, vector<32x128xf32> -> vector<32x128xf32>
    %c0_8 = arith.constant 0 : index
    %c0_9 = arith.constant 0 : index
    %26 = vector.load %arg3[%c0_8, %c0_9] : memref<32x1xf32, #tpu.memory_space<vmem>>, vector<32x1xf32>
    %27 = vector.broadcast %26 : vector<32x1xf32> to vector<32x128xf32>
    %28 = arith.addf %25, %27 : vector<32x128xf32>
    %cst_10 = arith.constant 0.000000e+00 : f32
    %29 = vector.broadcast %cst_10 : f32 to vector<32x128xf32>
    %30 = arith.maximumf %28, %29 : vector<32x128xf32>
    %c0_11 = arith.constant 0 : index
    %c0_12 = arith.constant 0 : index
    %31 = vector.load %arg4[%c0_11, %c0_12] : memref<32x32xf32, #tpu.memory_space<vmem>>, vector<32x32xf32>
    %cst_13 = arith.constant dense<0.000000e+00> : vector<32x128xf32>
    %32 = tpu.matmul %31, %30, %cst_13 {dimension_numbers = #tpu.dot_dimension_numbers<[1], [0], [0], [1], [0, 0, 1, 1], [], []>} : vector<32x32xf32>, vector<32x128xf32>, vector<32x128xf32> -> vector<32x128xf32>
    %c0_14 = arith.constant 0 : index
    %c0_15 = arith.constant 0 : index
    %33 = vector.load %arg5[%c0_14, %c0_15] : memref<32x1xf32, #tpu.memory_space<vmem>>, vector<32x1xf32>
    %34 = vector.broadcast %33 : vector<32x1xf32> to vector<32x128xf32>
    %35 = arith.addf %32, %34 : vector<32x128xf32>
    %cst_16 = arith.constant 0.000000e+00 : f32
    %36 = vector.broadcast %cst_16 : f32 to vector<32x128xf32>
    %37 = arith.maximumf %35, %36 : vector<32x128xf32>
    %c1_i32_17 = arith.constant 1 : i32
    %38 = tpu.dynamic_rotate %37 by %c1_i32_17 dim 1 : vector<32x128xf32>, i32 -> vector<32x128xf32>
    %cst_18 = arith.constant 0.000000e+00 : f32
    %39 = vector.shape_cast %5 : vector<1x128xi1> to vector<1x128xi1>
    %40 = vector.broadcast %39 : vector<1x128xi1> to vector<32x128xi1>
    %41 = vector.broadcast %cst_18 : f32 to vector<32x128xf32>
    %42 = arith.select %40, %38, %41 : vector<32x128xi1>, vector<32x128xf32>
    %c127_i32_19 = arith.constant 127 : i32
    %43 = tpu.dynamic_rotate %37 by %c127_i32_19 dim 1 : vector<32x128xf32>, i32 -> vector<32x128xf32>
    %cst_20 = arith.constant 0.000000e+00 : f32
    %44 = vector.shape_cast %10 : vector<1x128xi1> to vector<1x128xi1>
    %45 = vector.broadcast %44 : vector<1x128xi1> to vector<32x128xi1>
    %46 = vector.broadcast %cst_20 : f32 to vector<32x128xf32>
    %47 = arith.select %45, %43, %46 : vector<32x128xi1>, vector<32x128xf32>
    %48 = tpu.concatenate %42, %37, %47 in 0 : vector<32x128xf32>, vector<32x128xf32>, vector<32x128xf32> -> vector<96x128xf32>
    %c0_21 = arith.constant 0 : index
    %c0_22 = arith.constant 0 : index
    %49 = vector.load %arg6[%c0_21, %c0_22] : memref<16x96xf32, #tpu.memory_space<vmem>>, vector<16x96xf32>
    %cst_23 = arith.constant dense<0.000000e+00> : vector<16x128xf32>
    %50 = tpu.matmul %49, %48, %cst_23 {dimension_numbers = #tpu.dot_dimension_numbers<[1], [0], [0], [1], [0, 0, 1, 1], [], []>} : vector<16x96xf32>, vector<96x128xf32>, vector<16x128xf32> -> vector<16x128xf32>
    %c0_24 = arith.constant 0 : index
    %c0_25 = arith.constant 0 : index
    %51 = vector.load %arg7[%c0_24, %c0_25] : memref<16x1xf32, #tpu.memory_space<vmem>>, vector<16x1xf32>
    %52 = vector.broadcast %51 : vector<16x1xf32> to vector<16x128xf32>
    %53 = arith.addf %50, %52 : vector<16x128xf32>
    %54 = tpu.iota {dimensions = array<i32: 0>} : vector<16x1xi32>
    %c8_i32 = arith.constant 8 : i32
    %c0_i32 = arith.constant 0 : i32
    %55 = arith.cmpi eq, %c8_i32, %c0_i32 : i32
    %c1_i32_26 = arith.constant 1 : i32
    %56 = arith.select %55, %c1_i32_26, %c8_i32 : i32
    %57 = vector.broadcast %56 : i32 to vector<16x1xi32>
    %58 = arith.remsi %54, %57 : vector<16x1xi32>
    %c0_i32_27 = arith.constant 0 : i32
    %59 = vector.broadcast %c0_i32_27 : i32 to vector<16x1xi32>
    %60 = arith.cmpi ne, %58, %59 : vector<16x1xi32>
    %c0_i32_28 = arith.constant 0 : i32
    %61 = vector.broadcast %c0_i32_28 : i32 to vector<16x1xi32>
    %62 = arith.cmpi slt, %58, %61 : vector<16x1xi32>
    %c0_i32_29 = arith.constant 0 : i32
    %63 = arith.cmpi slt, %56, %c0_i32_29 : i32
    %64 = vector.broadcast %63 : i1 to vector<16x1xi1>
    %65 = vector.broadcast %64 : vector<16x1xi1> to vector<16x1xi1>
    %66 = arith.xori %62, %65 : vector<16x1xi1>
    %67 = arith.andi %66, %60 : vector<16x1xi1>
    %68 = vector.broadcast %56 : i32 to vector<16x1xi32>
    %69 = arith.addi %58, %68 : vector<16x1xi32>
    %70 = arith.select %67, %69, %58 : vector<16x1xi1>, vector<16x1xi32>
    %cst_30 = arith.constant 2.000000e+00 : f32
    %71 = vector.broadcast %cst_30 : f32 to vector<16x128xf32>
    %72 = arith.addf %53, %71 : vector<16x128xf32>
    %73 = arith.negf %72 : vector<16x128xf32>
    %74 = math.exp %73 : vector<16x128xf32>
    %cst_31 = arith.constant 1.000000e+00 : f32
    %75 = vector.broadcast %cst_31 : f32 to vector<16x128xf32>
    %76 = arith.addf %75, %74 : vector<16x128xf32>
    %77 = arith.divf %75, %76 : vector<16x128xf32>
    %cst_32 = arith.constant 1.000000e-07 : f32
    %78 = vector.broadcast %cst_32 : f32 to vector<16x128xf32>
    %79 = arith.addf %77, %78 : vector<16x128xf32>
    %c4_i32 = arith.constant 4 : i32
    %80 = vector.broadcast %c4_i32 : i32 to vector<16x1xi32>
    %81 = arith.cmpi slt, %70, %80 : vector<16x1xi32>
    %82 = vector.shape_cast %81 : vector<16x1xi1> to vector<16x1xi1>
    %83 = vector.broadcast %82 : vector<16x1xi1> to vector<16x128xi1>
    %84 = arith.select %83, %79, %53 : vector<16x128xi1>, vector<16x128xf32>
    %c0_33 = arith.constant 0 : index
    %c0_34 = arith.constant 0 : index
    %85 = vector.load %arg8[%c0_33, %c0_34] : memref<16x128xf32, #tpu.memory_space<vmem>>, vector<16x128xf32>
    tpu.vector_store %arg8[%c0_33, %c0_34], %84 {strides = array<i32>} : memref<16x128xf32, #tpu.memory_space<vmem>>, vector<16x128xf32>,
    return
  }
  func.func @transform_0(%arg0: i32) -> (i32, i32) {
    %c0_i32 = arith.constant 0 : i32
    %c0_i32_0 = arith.constant 0 : i32
    return %arg0, %c0_i32 : i32, i32
  }
  func.func @transform_1(%arg0: i32) -> (i32, i32, i32) {
    %c0_i32 = arith.constant 0 : i32
    %c0_i32_0 = arith.constant 0 : i32
    %c0_i32_1 = arith.constant 0 : i32
    return %arg0, %c0_i32, %c0_i32_0 : i32, i32, i32
  }
  func.func @transform_2(%arg0: i32) -> (i32, i32) {
    %c0_i32 = arith.constant 0 : i32
    %c0_i32_0 = arith.constant 0 : i32
    return %arg0, %c0_i32 : i32, i32
  }
  func.func @transform_3(%arg0: i32) -> (i32, i32) {
    %c0_i32 = arith.constant 0 : i32
    %c0_i32_0 = arith.constant 0 : i32
    %c0_i32_1 = arith.constant 0 : i32
    return %c0_i32, %c0_i32_0 : i32, i32
  }
  func.func @transform_4(%arg0: i32) -> (i32, i32) {
    %c0_i32 = arith.constant 0 : i32
    %c0_i32_0 = arith.constant 0 : i32
    %c0_i32_1 = arith.constant 0 : i32
    return %c0_i32, %c0_i32_0 : i32, i32
  }
  func.func @transform_5(%arg0: i32) -> (i32, i32) {
    %c0_i32 = arith.constant 0 : i32
    %c0_i32_0 = arith.constant 0 : i32
    %c0_i32_1 = arith.constant 0 : i32
    return %c0_i32, %c0_i32_0 : i32, i32
  }
  func.func @transform_6(%arg0: i32) -> (i32, i32) {
    %c0_i32 = arith.constant 0 : i32
    %c0_i32_0 = arith.constant 0 : i32
    %c0_i32_1 = arith.constant 0 : i32
    return %c0_i32, %c0_i32_0 : i32, i32
  }
  func.func @transform_7(%arg0: i32) -> (i32, i32) {
    %c0_i32 = arith.constant 0 : i32
    %c0_i32_0 = arith.constant 0 : i32
    return %arg0, %c0_i32 : i32, i32
  }
}

</mosaic_0001>

<llo_original>
// kernel: tpu_custom_call.1
$region0: #{tpu_custom_call.1}
  #allocation0 [shape = 'u32[]', space=smem, size = 0x4, offset = 0x4, fixed_abs, tag = 'smem constant byte address 0x4 - core index']
  #allocation1 [shape = 'u32[144,128]{1,0:T(1,128)}', space=vmem, size = 0x12000, scoped, tag = 'internal scratch']
  %s0 = inlined_call_operand.vmem [shape: f32[8,128], index: 0, kind: input, shape index: {}]
  %s1 = inlined_call_operand.vmem [shape: f32[1,32,24], index: 1, kind: input, shape index: {}]
  %s2 = inlined_call_operand.vmem [shape: f32[32,1], index: 2, kind: input, shape index: {}]
  %s3 = inlined_call_operand.vmem [shape: f32[32,32], index: 3, kind: input, shape index: {}]
  %s4 = inlined_call_operand.vmem [shape: f32[32,1], index: 4, kind: input, shape index: {}]
  %s5 = inlined_call_operand.vmem [shape: f32[16,96], index: 5, kind: input, shape index: {}]
  %s6 = inlined_call_operand.vmem [shape: f32[16,1], index: 6, kind: input, shape index: {}]
  %s7 = inlined_call_operand.hbm [shape: f32[16,128], index: 7, kind: output, shape index: {}]
  %s8 = sld [smem:[#allocation0]]
  $region38: #{tpu_custom_call.1} parent=0
    _
  %s10 = ssub.s32 1, %s8
  %s11 = scalar_select 0, %s10, %s8
  $region1: #{tpu_custom_call.1} parent=0
    #allocation2 [shape = 'u8[8192]{0}', space=vmem, size = 0x2000, scoped, tag = 'output window, operand 0, single buffered']
    #allocation3 [shape = 's32[1]{0}', space=sflag, size = 0x4, scoped, tag = 'scoped memory for tpu_custom_call.1']
    %12 = vsyncpa [#allocation3], 0
    // Predicated region
    $region2: #{tpu_custom_call.1} parent=1 // pred_check
      _
    $region3: #{tpu_custom_call.1} parent=1 // pred_check_branch
      %14 = sbr.rel (0) target = $region5
    $region4: #{tpu_custom_call.1} parent=1 // pred_region
      _
    $region5: #{tpu_custom_call.1} parent=1 // pred_fallthru
      _
    // Predicated region
    $region6: #{tpu_custom_call.1} parent=1 // pred_check
      _
    $region7: #{tpu_custom_call.1} parent=1 // pred_check_branch
      %16 = sbr.rel (0) target = $region9
    $region8: #{tpu_custom_call.1} parent=1 // pred_region
      _
    $region9: #{tpu_custom_call.1} parent=1 // pred_fallthru
      _
    // Predicated region
    $region10: #{tpu_custom_call.1} parent=1 // pred_check
      _
    $region11: #{tpu_custom_call.1} parent=1 // pred_check_branch
      %18 = sbr.rel (0) target = $region13
    $region12: #{tpu_custom_call.1} parent=1 // pred_region
      _
    $region13: #{tpu_custom_call.1} parent=1 // pred_fallthru
      _
    // Predicated region
    $region14: #{tpu_custom_call.1} parent=1 // pred_check
      _
    $region15: #{tpu_custom_call.1} parent=1 // pred_check_branch
      %20 = sbr.rel (0) target = $region17
    $region16: #{tpu_custom_call.1} parent=1 // pred_region
      _
    $region17: #{tpu_custom_call.1} parent=1 // pred_fallthru
      _
    // Predicated region
    $region18: #{tpu_custom_call.1} parent=1 // pred_check
      _
    $region19: #{tpu_custom_call.1} parent=1 // pred_check_branch
      %22 = sbr.rel (0) target = $region21
    $region20: #{tpu_custom_call.1} parent=1 // pred_region
      _
    $region21: #{tpu_custom_call.1} parent=1 // pred_fallthru
      _
    // Predicated region
    $region22: #{tpu_custom_call.1} parent=1 // pred_check
      _
    $region23: #{tpu_custom_call.1} parent=1 // pred_check_branch
      %24 = sbr.rel (0) target = $region25
    $region24: #{tpu_custom_call.1} parent=1 // pred_region
      _
    $region25: #{tpu_custom_call.1} parent=1 // pred_fallthru
      _
    // Predicated region
    $region26: #{tpu_custom_call.1} parent=1 // pred_check
      _
    $region27: #{tpu_custom_call.1} parent=1 // pred_check_branch
      %26 = sbr.rel (0) target = $region29
    $region28: #{tpu_custom_call.1} parent=1 // pred_region
      _
    $region29: #{tpu_custom_call.1} parent=1 // pred_fallthru
      _
    %v27 = vlaneseq
    %v28 = vand.u32 %v27, 127
    %vm29 = vcmp.ge.s32.totalorder %v28, 1
    %vm30 = vcmp.lt.s32.totalorder %v28, 129
    %vm31 = vmand %vm29, %vm30
    %vm32 = vcmp.ge.s32.totalorder %v28, 4294967295
    %vm33 = vcmp.lt.s32.totalorder %v28, 127
    %vm34 = vmand %vm32, %vm33
    %v35 = vld [vmem:[%s0] sm:$0xff]
    %36 = vrot.lane.b32.xlu0 %v35, 1
    %v37 = vpop.permute.xlu0 %36
    %v38 = vsel %vm31, 1, 0
    %vm39 = vcmp.eq.s32.totalorder %v38, 1
    %v40 = vsel %vm39, %v37, 0.0
    %41 = vrot.lane.b32.xlu0 %v35, 127
    %v42 = vpop.permute.xlu0 %41
    %v43 = vsel %vm34, 1, 0
    %vm44 = vcmp.eq.s32.totalorder %v43, 1
    %v45 = vsel %vm44, %v42, 0.0
    %v46 = vld [vmem:[%s1] sm:$0xff]
    %v47 = vld [vmem:[%s1 + $0x8] sm:$0xff]
    %v48 = vld [vmem:[%s1 + $0x10] sm:$0xff]
    %v49 = vld [vmem:[%s1 + $0x18] sm:$0xff]
    %v50 = vld [vmem:[%s2] sm:$0xff]
    %v51 = vld [vmem:[%s2 + $0x8] sm:$0xff]
    %v52 = vld [vmem:[%s2 + $0x10] sm:$0xff]
    %v53 = vld [vmem:[%s2 + $0x18] sm:$0xff]
    %55 = vset.pattern.permute.xlu0 0
    %56 = vperm.xlu0 %55, %v50
    %v57 = vpop.permute.xlu0 %56
    %60 = vset.pattern.permute.xlu0 0
    %61 = vperm.xlu0 %60, %v51
    %v62 = vpop.permute.xlu0 %61
    %65 = vset.pattern.permute.xlu0 0
    %66 = vperm.xlu0 %65, %v52
    %v67 = vpop.permute.xlu0 %66
    %70 = vset.pattern.permute.xlu0 0
    %71 = vperm.xlu0 %70, %v53
    %v72 = vpop.permute.xlu0 %71
    %vm74 = vcmask 195584
    %v76 = vsel %vm74, %v46, 0
    %v79 = vsel %vm74, %v47, 0
    %v82 = vsel %vm74, %v48, 0
    %v85 = vsel %vm74, %v49, 0
    %87 = vmatprep.subr.mxu0 0.0
    %88 = vmatpush1.msra.mxu0 0.0
    %89 = vmatprep.subr.mxu0 0.0
    %90 = vmatpush1.msra.mxu0 0.0
    %91 = vmatprep.subr.mxu0 0.0
    %92 = vmatpush1.msra.mxu0 0.0
    %93 = vmatprep.subr.mxu0 0.0
    %94 = vmatpush1.msra.mxu0 0.0
    %95 = vmatprep.subr.mxu0 0.0
    %96 = vmatpush1.msra.mxu0 0.0
    %97 = vmatprep.subr.mxu0 0.0
    %98 = vmatpush1.msra.mxu0 0.0
    %99 = vmatprep.subr.mxu0 0.0
    %100 = vmatpush1.msra.mxu0 0.0
    %101 = vmatprep.subr.mxu0 0.0
    %102 = vmatpush1.msra.mxu0 0.0
    %103 = vmatprep.subr.mxu0 0.0
    %104 = vmatpush1.msra.mxu0 0.0
    %105 = vmatprep.subr.mxu0 0.0
    %106 = vmatpush1.msra.mxu0 0.0
    %107 = vmatprep.subr.mxu0 0.0
    %108 = vmatpush1.msra.mxu0 0.0
    %109 = vmatprep.subr.mxu0 0.0
    %110 = vmatpush1.msra.mxu0 0.0
    %111 = vmatprep.subr.mxu0 0.0
    %112 = vmatpush1.msra.mxu0 0.0
    %113 = vmatprep.subr.mxu0 0.0
    %114 = vmatpush1.msra.mxu0 %v45
    %115 = vmatprep.subr.mxu0 0.0
    %116 = vmatpush1.msra.mxu0 %v35
    %117 = vmatprep.subr.mxu0 0.0
    %118 = vmatpush1.msra.mxu0 %v40
    %119 = vmatprep.subr.mxu0 0.0
    %120 = vmatpush2.msra.mxu0 0.0
    %121 = vmatprep.subr.mxu0 0.0
    %122 = vmatpush2.msra.mxu0 0.0
    %123 = vmatprep.subr.mxu0 0.0
    %124 = vmatpush2.msra.mxu0 0.0
    %125 = vmatprep.subr.mxu0 0.0
    %126 = vmatpush2.msra.mxu0 0.0
    %127 = vmatprep.subr.mxu0 0.0
    %128 = vmatpush2.msra.mxu0 0.0
    %129 = vmatprep.subr.mxu0 0.0
    %130 = vmatpush2.msra.mxu0 0.0
    %131 = vmatprep.subr.mxu0 0.0
    %132 = vmatpush2.msra.mxu0 0.0
    %133 = vmatprep.subr.mxu0 0.0
    %134 = vmatpush2.msra.mxu0 0.0
    %135 = vmatprep.subr.mxu0 0.0
    %136 = vmatpush2.msra.mxu0 0.0
    %137 = vmatprep.subr.mxu0 0.0
    %138 = vmatpush2.msra.mxu0 0.0
    %139 = vmatprep.subr.mxu0 0.0
    %140 = vmatpush2.msra.mxu0 0.0
    %141 = vmatprep.subr.mxu0 0.0
    %142 = vmatpush2.msra.mxu0 0.0
    %143 = vmatprep.subr.mxu0 0.0
    %144 = vmatpush2.msra.mxu0 0.0
    %145 = vmatprep.subr.mxu0 0.0
    %146 = vmatpush2.msra.mxu0 0.0
    %147 = vmatprep.subr.mxu0 0.0
    %148 = vmatpush2.msra.mxu0 0.0
    %149 = vmatprep.subr.mxu0 0.0
    %150 = vmatpush2.msra.mxu0 0.0
    %151 = vmatprep.mubr.f32.mxu0 0.0
    %152 = vmatmul.mubr.f32.gmra.mxu0 %v76
    %v153 = vpop.f32.mrf.mxu0
    %v154 = vadd.f32 %v57, %v153
    %v155 = vpop.f32.mrf.mxu0
    %156 = vmatprep.mubr.f32.mxu0 0.0
    %157 = vmatmul.mubr.f32.gmra.mxu0 %v79
    %v158 = vpop.f32.mrf.mxu0
    %v159 = vadd.f32 %v62, %v158
    %v160 = vpop.f32.mrf.mxu0
    %161 = vmatprep.mubr.f32.mxu0 0.0
    %162 = vmatmul.mubr.f32.gmra.mxu0 %v82
    %v163 = vpop.f32.mrf.mxu0
    %v164 = vadd.f32 %v67, %v163
    %v165 = vpop.f32.mrf.mxu0
    %166 = vmatprep.mubr.f32.mxu0 0.0
    %167 = vmatmul.mubr.f32.gmra.mxu0 %v85
    %v168 = vpop.f32.mrf.mxu0
    %v169 = vadd.f32 %v72, %v168
    %v170 = vpop.f32.mrf.mxu0
    %171 = vdwg.mxu0
    %v172 = vmax.f32 %v154, 0.0
    %v173 = vmax.f32 %v159, 0.0
    %v174 = vmax.f32 %v164, 0.0
    %v175 = vmax.f32 %v169, 0.0
    %v176 = vld [vmem:[%s3] sm:$0xff]
    %v177 = vld [vmem:[%s3 + $0x8] sm:$0xff]
    %v178 = vld [vmem:[%s3 + $0x10] sm:$0xff]
    %v179 = vld [vmem:[%s3 + $0x18] sm:$0xff]
    %v180 = vld [vmem:[%s4] sm:$0xff]
    %v181 = vld [vmem:[%s4 + $0x8] sm:$0xff]
    %v182 = vld [vmem:[%s4 + $0x10] sm:$0xff]
    %v183 = vld [vmem:[%s4 + $0x18] sm:$0xff]
    %185 = vset.pattern.permute.xlu0 0
    %186 = vperm.xlu0 %185, %v180
    %v187 = vpop.permute.xlu0 %186
    %190 = vset.pattern.permute.xlu0 0
    %191 = vperm.xlu0 %190, %v181
    %v192 = vpop.permute.xlu0 %191
    %195 = vset.pattern.permute.xlu0 0
    %196 = vperm.xlu0 %195, %v182
    %v197 = vpop.permute.xlu0 %196
    %200 = vset.pattern.permute.xlu0 0
    %201 = vperm.xlu0 %200, %v183
    %v202 = vpop.permute.xlu0 %201
    %vm204 = vcmask 261120
    %v206 = vsel %vm204, %v176, 0
    %v209 = vsel %vm204, %v177, 0
    %v212 = vsel %vm204, %v178, 0
    %v215 = vsel %vm204, %v179, 0
    %217 = vmatprep.subr.mxu0 0.0
    %218 = vmatpush1.msra.mxu0 0.0
    %219 = vmatprep.subr.mxu0 0.0
    %220 = vmatpush1.msra.mxu0 0.0
    %221 = vmatprep.subr.mxu0 0.0
    %222 = vmatpush1.msra.mxu0 0.0
    %223 = vmatprep.subr.mxu0 0.0
    %224 = vmatpush1.msra.mxu0 0.0
    %225 = vmatprep.subr.mxu0 0.0
    %226 = vmatpush1.msra.mxu0 0.0
    %227 = vmatprep.subr.mxu0 0.0
    %228 = vmatpush1.msra.mxu0 0.0
    %229 = vmatprep.subr.mxu0 0.0
    %230 = vmatpush1.msra.mxu0 0.0
    %231 = vmatprep.subr.mxu0 0.0
    %232 = vmatpush1.msra.mxu0 0.0
    %233 = vmatprep.subr.mxu0 0.0
    %234 = vmatpush1.msra.mxu0 0.0
    %235 = vmatprep.subr.mxu0 0.0
    %236 = vmatpush1.msra.mxu0 0.0
    %237 = vmatprep.subr.mxu0 0.0
    %238 = vmatpush1.msra.mxu0 0.0
    %239 = vmatprep.subr.mxu0 0.0
    %240 = vmatpush1.msra.mxu0 0.0
    %241 = vmatprep.subr.mxu0 0.0
    %242 = vmatpush1.msra.mxu0 %v175
    %243 = vmatprep.subr.mxu0 0.0
    %244 = vmatpush1.msra.mxu0 %v174
    %245 = vmatprep.subr.mxu0 0.0
    %246 = vmatpush1.msra.mxu0 %v173
    %247 = vmatprep.subr.mxu0 0.0
    %248 = vmatpush1.msra.mxu0 %v172
    %249 = vmatprep.subr.mxu0 0.0
    %250 = vmatpush2.msra.mxu0 0.0
    %251 = vmatprep.subr.mxu0 0.0
    %252 = vmatpush2.msra.mxu0 0.0
    %253 = vmatprep.subr.mxu0 0.0
    %254 = vmatpush2.msra.mxu0 0.0
    %255 = vmatprep.subr.mxu0 0.0
    %256 = vmatpush2.msra.mxu0 0.0
    %257 = vmatprep.subr.mxu0 0.0
    %258 = vmatpush2.msra.mxu0 0.0
    %259 = vmatprep.subr.mxu0 0.0
    %260 = vmatpush2.msra.mxu0 0.0
    %261 = vmatprep.subr.mxu0 0.0
    %262 = vmatpush2.msra.mxu0 0.0
    %263 = vmatprep.subr.mxu0 0.0
    %264 = vmatpush2.msra.mxu0 0.0
    %265 = vmatprep.subr.mxu0 0.0
    %266 = vmatpush2.msra.mxu0 0.0
    %267 = vmatprep.subr.mxu0 0.0
    %268 = vmatpush2.msra.mxu0 0.0
    %269 = vmatprep.subr.mxu0 0.0
    %270 = vmatpush2.msra.mxu0 0.0
    %271 = vmatprep.subr.mxu0 0.0
    %272 = vmatpush2.msra.mxu0 0.0
    %273 = vmatprep.subr.mxu0 0.0
    %274 = vmatpush2.msra.mxu0 0.0
    %275 = vmatprep.subr.mxu0 0.0
    %276 = vmatpush2.msra.mxu0 0.0
    %277 = vmatprep.subr.mxu0 0.0
    %278 = vmatpush2.msra.mxu0 0.0
    %279 = vmatprep.subr.mxu0 0.0
    %280 = vmatpush2.msra.mxu0 0.0
    %281 = vmatprep.mubr.f32.mxu0 0.0
    %282 = vmatmul.mubr.f32.gmra.mxu0 %v206
    %v283 = vpop.f32.mrf.mxu0
    %v284 = vadd.f32 %v187, %v283
    %v285 = vpop.f32.mrf.mxu0
    %286 = vmatprep.mubr.f32.mxu0 0.0
    %287 = vmatmul.mubr.f32.gmra.mxu0 %v209
    %v288 = vpop.f32.mrf.mxu0
    %v289 = vadd.f32 %v192, %v288
    %v290 = vpop.f32.mrf.mxu0
    %291 = vmatprep.mubr.f32.mxu0 0.0
    %292 = vmatmul.mubr.f32.gmra.mxu0 %v212
    %v293 = vpop.f32.mrf.mxu0
    %v294 = vadd.f32 %v197, %v293
    %v295 = vpop.f32.mrf.mxu0
    %296 = vmatprep.mubr.f32.mxu0 0.0
    %297 = vmatmul.mubr.f32.gmra.mxu0 %v215
    %v298 = vpop.f32.mrf.mxu0
    %v299 = vadd.f32 %v202, %v298
    %v300 = vpop.f32.mrf.mxu0
    %301 = vdwg.mxu0
    %v302 = vmax.f32 %v284, 0.0
    %v303 = vmax.f32 %v289, 0.0
    %v304 = vmax.f32 %v294, 0.0
    %v305 = vmax.f32 %v299, 0.0
    %306 = vrot.lane.b32.xlu0 %v302, 1
    %v307 = vpop.permute.xlu0 %306
    %308 = vrot.lane.b32.xlu0 %v303, 1
    %v309 = vpop.permute.xlu0 %308
    %310 = vrot.lane.b32.xlu0 %v304, 1
    %v311 = vpop.permute.xlu0 %310
    %312 = vrot.lane.b32.xlu0 %v305, 1
    %v313 = vpop.permute.xlu0 %312
    %v314 = vsel %vm39, %v307, 0.0
    %v315 = vsel %vm39, %v309, 0.0
    %v316 = vsel %vm39, %v311, 0.0
    %v317 = vsel %vm39, %v313, 0.0
    %318 = vrot.lane.b32.xlu0 %v302, 127
    %v319 = vpop.permute.xlu0 %318
    %320 = vrot.lane.b32.xlu0 %v303, 127
    %v321 = vpop.permute.xlu0 %320
    %322 = vrot.lane.b32.xlu0 %v304, 127
    %v323 = vpop.permute.xlu0 %322
    %324 = vrot.lane.b32.xlu0 %v305, 127
    %v325 = vpop.permute.xlu0 %324
    %v326 = vsel %vm44, %v319, 0.0
    %v327 = vsel %vm44, %v321, 0.0
    %v328 = vsel %vm44, %v323, 0.0
    %v329 = vsel %vm44, %v325, 0.0
    %v330 = vld [vmem:[%s5] sm:$0xff]
    %v331 = vld [vmem:[%s5 + $0x8] sm:$0xff]
    %v332 = vld [vmem:[%s6] sm:$0xff]
    %v333 = vld [vmem:[%s6 + $0x8] sm:$0xff]
    %335 = vset.pattern.permute.xlu0 0
    %336 = vperm.xlu0 %335, %v332
    %v337 = vpop.permute.xlu0 %336
    %340 = vset.pattern.permute.xlu0 0
    %341 = vperm.xlu0 %340, %v333
    %v342 = vpop.permute.xlu0 %341
    %vm344 = vcmask 785408
    %v346 = vsel %vm344, %v330, 0
    %v349 = vsel %vm344, %v331, 0
    %351 = vmatprep.subr.mxu0 0.0
    %352 = vmatpush1.msra.mxu0 0.0
    %353 = vmatprep.subr.mxu0 0.0
    %354 = vmatpush1.msra.mxu0 0.0
    %355 = vmatprep.subr.mxu0 0.0
    %356 = vmatpush1.msra.mxu0 0.0
    %357 = vmatprep.subr.mxu0 0.0
    %358 = vmatpush1.msra.mxu0 0.0
    %359 = vmatprep.subr.mxu0 0.0
    %360 = vmatpush1.msra.mxu0 %v329
    %361 = vmatprep.subr.mxu0 0.0
    %362 = vmatpush1.msra.mxu0 %v328
    %363 = vmatprep.subr.mxu0 0.0
    %364 = vmatpush1.msra.mxu0 %v327
    %365 = vmatprep.subr.mxu0 0.0
    %366 = vmatpush1.msra.mxu0 %v326
    %367 = vmatprep.subr.mxu0 0.0
    %368 = vmatpush1.msra.mxu0 %v305
    %369 = vmatprep.subr.mxu0 0.0
    %370 = vmatpush1.msra.mxu0 %v304
    %371 = vmatprep.subr.mxu0 0.0
    %372 = vmatpush1.msra.mxu0 %v303
    %373 = vmatprep.subr.mxu0 0.0
    %374 = vmatpush1.msra.mxu0 %v302
    %375 = vmatprep.subr.mxu0 0.0
    %376 = vmatpush1.msra.mxu0 %v317
    %377 = vmatprep.subr.mxu0 0.0
    %378 = vmatpush1.msra.mxu0 %v316
    %379 = vmatprep.subr.mxu0 0.0
    %380 = vmatpush1.msra.mxu0 %v315
    %381 = vmatprep.subr.mxu0 0.0
    %382 = vmatpush1.msra.mxu0 %v314
    %383 = vmatprep.subr.mxu0 0.0
    %384 = vmatpush2.msra.mxu0 0.0
    %385 = vmatprep.subr.mxu0 0.0
    %386 = vmatpush2.msra.mxu0 0.0
    %387 = vmatprep.subr.mxu0 0.0
    %388 = vmatpush2.msra.mxu0 0.0
    %389 = vmatprep.subr.mxu0 0.0
    %390 = vmatpush2.msra.mxu0 0.0
    %391 = vmatprep.subr.mxu0 0.0
    %392 = vmatpush2.msra.mxu0 0.0
    %393 = vmatprep.subr.mxu0 0.0
    %394 = vmatpush2.msra.mxu0 0.0
    %395 = vmatprep.subr.mxu0 0.0
    %396 = vmatpush2.msra.mxu0 0.0
    %397 = vmatprep.subr.mxu0 0.0
    %398 = vmatpush2.msra.mxu0 0.0
    %399 = vmatprep.subr.mxu0 0.0
    %400 = vmatpush2.msra.mxu0 0.0
    %401 = vmatprep.subr.mxu0 0.0
    %402 = vmatpush2.msra.mxu0 0.0
    %403 = vmatprep.subr.mxu0 0.0
    %404 = vmatpush2.msra.mxu0 0.0
    %405 = vmatprep.subr.mxu0 0.0
    %406 = vmatpush2.msra.mxu0 0.0
    %407 = vmatprep.subr.mxu0 0.0
    %408 = vmatpush2.msra.mxu0 0.0
    %409 = vmatprep.subr.mxu0 0.0
    %410 = vmatpush2.msra.mxu0 0.0
    %411 = vmatprep.subr.mxu0 0.0
    %412 = vmatpush2.msra.mxu0 0.0
    %413 = vmatprep.subr.mxu0 0.0
    %414 = vmatpush2.msra.mxu0 0.0
    %415 = vmatprep.mubr.f32.mxu0 0.0
    %416 = vmatmul.mubr.f32.gmra.mxu0 %v346
    %v417 = vpop.f32.mrf.mxu0
    %v418 = vadd.f32 %v337, %v417
    %v419 = vpop.f32.mrf.mxu0
    %420 = vmatprep.mubr.f32.mxu0 0.0
    %421 = vmatmul.mubr.f32.gmra.mxu0 %v349
    %v422 = vpop.f32.mrf.mxu0
    %v423 = vadd.f32 %v342, %v422
    %v424 = vpop.f32.mrf.mxu0
    %425 = vdwg.mxu0
    %v426 = vlaneseq
    %v427 = vshrl.u32 %v426, 7
    %v428 = vadd.s32 %v427, 8
    %vm429 = vcmp.lt.s32.totalorder %v427, 0
    %v430 = vsub.s32 0, %v427
    %v431 = vsel %vm429, %v430, %v427
    %v432 = vshrl.u32 %v431, 3
    %v433 = vand.u32 %v431, 7
    %v434 = vsub.s32 0, %v433
    %v435 = vsel %vm429, %v434, %v433
    %vm436 = vcmp.lt.s32.totalorder %v428, 0
    %v437 = vsub.s32 0, %v428
    %v438 = vsel %vm436, %v437, %v428
    %v439 = vshrl.u32 %v438, 3
    %v440 = vand.u32 %v438, 7
    %v441 = vsub.s32 0, %v440
    %v442 = vsel %vm436, %v441, %v440
    %vm443 = vcmp.ne.s32.totalorder %v435, 0
    %vm444 = vcmp.ne.s32.totalorder %v442, 0
    %vm445 = vcmp.lt.s32.totalorder %v435, 0
    %vm446 = vcmp.lt.s32.totalorder %v442, 0
    %vm447 = vmand %vm445, %vm443
    %vm448 = vmand %vm446, %vm444
    %v449 = vadd.s32 %v435, 8
    %v450 = vadd.s32 %v442, 8
    %v451 = vsel %vm447, %v449, %v435
    %v452 = vsel %vm448, %v450, %v442
    %v453 = vadd.f32 %v418, 2.0
    %v454 = vadd.f32 %v423, 2.0
    %v455 = vxor.u32 %v453, 2147483648
    %v456 = vxor.u32 %v454, 2147483648
    %v457 = vmul.f32 %v455, 1.442695
    %v458 = vpow.pop %v457
    %v459 = vmul.f32 %v456, 1.442695
    %v460 = vpow.pop %v459
    %v461 = vadd.f32 %v458, 1.0
    %v462 = vadd.f32 %v460, 1.0
    %v463 = vrcp.pop %v461
    %v464 = vmul.f32 1.0, %v463
    %v465 = vrcp.pop %v462
    %v466 = vmul.f32 1.0, %v465
    %v467 = vadd.f32 %v464, 1e-07
    %v468 = vadd.f32 %v466, 1e-07
    %vm469 = vcmp.lt.s32.totalorder %v451, 4
    %vm470 = vcmp.lt.s32.totalorder %v452, 4
    %v471 = vsel %vm469, 1, 0
    %v472 = vsel %vm470, 1, 0
    %vm473 = vcmp.eq.s32.totalorder %v471, 1
    %vm474 = vcmp.eq.s32.totalorder %v472, 1
    %v475 = vsel %vm473, %v467, %v418
    %v476 = vsel %vm474, %v468, %v423
    %477 = vst [vmem:[#allocation2] sm:$0xff] %v475
    %478 = vst [vmem:[#allocation2 + $0x8] sm:$0xff] %v476
    // Predicated region
    $region30: #{tpu_custom_call.1} parent=1 // pred_check
      _
    $region31: #{tpu_custom_call.1} parent=1 // pred_check_branch
      %480 = sbr.rel (0) target = $region33
    $region32: #{tpu_custom_call.1} parent=1 // pred_region
      %s482 = ssub.s32 256, 256
      %483 = vsyncadd [#allocation3], %s482
      %s484 = sshll.u32 [#allocation2], 4
      %s485 = int_to_ptr.vmem [resolvable:$true] %s484
      %490 = dma.vmem_to_hbm [thread:$0]  %s485, 256, %s7, [#allocation3], 128, 128, 8
    $region33: #{tpu_custom_call.1} parent=1 // pred_fallthru
      _
    // Predicated region
    $region34: #{tpu_custom_call.1} parent=1 // pred_check
      _
    $region35: #{tpu_custom_call.1} parent=1 // pred_check_branch
      %492 = sbr.rel (0) target = $region37
    $region36: #{tpu_custom_call.1} parent=1 // pred_region
      %493 = dma.done [#allocation3], 256
    $region37: #{tpu_custom_call.1} parent=1 // pred_fallthru
      _
    %494 = vsyncpa [#allocation3], 1

</llo_original>
